<compile_context>
chip_gen: v5e
topology: v5e:2x2
jax: 0.10.0
libtpu: 0.0.40
codegen_flags: <defaults>
</compile_context>

<pallas_src>
import jax
import jax.numpy as jnp
from jax.experimental import pallas as pl
from jax.experimental.pallas import tpu as pltpu


def lie_func_kernel(x_ref, w0_ref, w1_ref, b_ref, col_ref, o_ref):
    """One (Bt, D, tl) tile of y = x + ReLU(conv1d_k2_pad1(x))[:, :, :-1].

    x_ref   : (Bt, D, tl)   io-dtype input tile (lane-dense along L)
    w0_ref  : (D, D)        conv tap multiplying x[:, t-1]
    w1_ref  : (D, D)        conv tap multiplying x[:, t]
    b_ref   : (D, 1)        f32 bias
    col_ref : (Bt, 1, D, 1) f32 precomputed correct output column 0 of this tile
    o_ref   : (Bt, D, tl)   io-dtype output tile
    """
    w0 = w0_ref[...]
    w1 = w1_ref[...]
    bias = b_ref[...]                                    # (D, 1) f32
    bt = x_ref.shape[0]

    # Statically unrolled over the (small) folded-batch dim.
    for b in range(bt):
        x = x_ref[b]                                     # (D, tl) io-dtype
        # Two K=D MXU matmuls with f32 accumulation (no materialized x_shift).
        z0 = jnp.dot(w0, x, preferred_element_type=jnp.float32)
        z1 = jnp.dot(w1, x, preferred_element_type=jnp.float32)
        # Time shift applied AFTER the matmul: rotate z0 right by one lane (XLU).
        pre = pltpu.roll(z0, shift=1, axis=1) + z1 + bias
        y = x.astype(jnp.float32) + jnp.maximum(pre, 0.0)
        o_ref[b] = y.astype(o_ref.dtype)
        # Column 0 wrapped around from this tile's last column; overwrite it with
        # the precomputed correct value (uses x[:, j*tl - 1]; zeros for j == 0).
        o_ref[b, :, 0:1] = col_ref[b, 0].astype(o_ref.dtype)


def _choose_tiles(B, D, L_pad, io_itemsize, *, max_tl, vmem_budget, dma_target,
                  max_bt):
    """Pick (Bt, tl) so per-step DMA is large but VMEM stays within budget."""
    tls = [c for c in range(128, min(L_pad, max_tl) + 1, 128) if L_pad % c == 0]
    if not tls:                       # unreachable: L_pad is a multiple of 128
        tls = [128]

    def est(bt, tl):
        io_tile = bt * D * tl * io_itemsize
        return (4 * io_tile                      # x + out tiles, double-buffered
                + 4 * D * D * io_itemsize        # w0 + w1 (resident, 2 bufs worst case)
                + 6 * D * tl * 4                 # f32 temporaries (z0, z1, pre, y, ...)
                + 4 * bt * D * 4 + 8 * D)        # col0 tile + bias

    fitting = [c for c in tls if est(1, c) <= vmem_budget]
    tl = max(fitting) if fitting else min(tls)

    bt = 1
    if D * tl * io_itemsize < dma_target:
        for cand in range(2, min(B, max_bt) + 1):
            if B % cand:
                continue
            if est(cand, tl) > vmem_budget:
                break
            bt = cand
            if cand * D * tl * io_itemsize >= dma_target:
                break
    return bt, tl, est(bt, tl)


def lie_func_forward(x_ncl, weight, bias, *, io_dtype=jnp.bfloat16,
                     max_tl=2048, vmem_budget=20 * 2**20, dma_target=1 * 2**20,
                     max_bt=16):
    """x_ncl: (B, D, L) float (PyTorch NCL), weight: (D, D, 2), bias: (D,).

    Returns y of dtype `io_dtype` and shape (B, D, L). Use io_dtype=jnp.float32
    to match the PyTorch f32 reference bit-for-bit (up to f32 rounding).
    """
    B, D, L = x_ncl.shape

    # Pad L up to a multiple of 128 so lane tiles are dense and aligned. Padded
    # columns only produce throw-away outputs and are sliced off afterwards.
    L_pad = ((L + 127) // 128) * 128
    x_pad = x_ncl if L_pad == L else jnp.pad(
        x_ncl, ((0, 0), (0, 0), (0, L_pad - L)))

    io_itemsize = jnp.dtype(io_dtype).itemsize
    Bt, tl, vmem_est = _choose_tiles(
        B, D, L_pad, io_itemsize, max_tl=max_tl, vmem_budget=vmem_budget,
        dma_target=dma_target, max_bt=max_bt)
    num_l = L_pad // tl

    # HBM-side tensors in the (narrow) I/O dtype; f32 accumulation in-kernel.
    x_in = x_pad.astype(io_dtype)
    w0 = weight[:, :, 0].astype(io_dtype)
    w1 = weight[:, :, 1].astype(io_dtype)
    b2d = bias.reshape(D, 1).astype(jnp.float32)

    # Precompute (tiny, B*D*num_l elems) the correct output column 0 of every
    # L-tile: it needs x[:, j*tl - 1] (zeros for j == 0), which removes the
    # sequential carry so both grid axes can be "parallel". Use the same
    # io-dtype-rounded operands as the kernel so precision matches.
    xf = x_in.astype(jnp.float32)
    w0f, w1f = w0.astype(jnp.float32), w1.astype(jnp.float32)
    starts = jnp.arange(num_l) * tl                              # (num_l,)
    x_start = xf[:, :, starts]                                   # (B, D, num_l)
    x_prev = xf[:, :, jnp.maximum(starts - 1, 0)]                # (B, D, num_l)
    x_prev = jnp.where((starts == 0)[None, None, :], 0.0, x_prev)
    pre0 = (jnp.einsum('od,bdj->boj', w0f, x_prev)
            + jnp.einsum('od,bdj->boj', w1f, x_start)
            + bias.astype(jnp.float32)[None, :, None])
    y_col0 = x_start + jnp.maximum(pre0, 0.0)                    # (B, D, num_l)
    y_col0 = jnp.transpose(y_col0, (0, 2, 1))[..., None]         # (B, num_l, D, 1)
    y_col0 = y_col0.astype(jnp.float32)

    flops = 2 * B * L_pad * D * (2 * D) + 4 * B * D * L_pad
    bytes_accessed = (2 * B * D * L_pad * io_itemsize            # x in + y out
                      + 2 * D * D * io_itemsize + D * 4
                      + B * num_l * D * 4)

    out = pl.pallas_call(
        lie_func_kernel,
        out_shape=jax.ShapeDtypeStruct((B, D, L_pad), io_dtype),
        grid_spec=pltpu.PrefetchScalarGridSpec(
            num_scalar_prefetch=0,
            grid=(B // Bt, num_l),
            in_specs=[
                pl.BlockSpec((Bt, D, tl), lambda bb, j: (bb, 0, j)),      # x tile
                pl.BlockSpec((D, D), lambda bb, j: (0, 0)),               # W tap0
                pl.BlockSpec((D, D), lambda bb, j: (0, 0)),               # W tap1
                pl.BlockSpec((D, 1), lambda bb, j: (0, 0)),               # bias
                pl.BlockSpec((Bt, 1, D, 1), lambda bb, j: (bb, j, 0, 0)), # col0 fix
            ],
            out_specs=pl.BlockSpec((Bt, D, tl), lambda bb, j: (bb, 0, j)),
        ),
        compiler_params=pltpu.CompilerParams(
            dimension_semantics=("parallel", "parallel"),
            vmem_limit_bytes=int(min(48 * 2**20, max(32 * 2**20, 2 * vmem_est)))),
        cost_estimate=pl.CostEstimate(
            flops=int(flops), transcendentals=0,
            bytes_accessed=int(bytes_accessed)),
    )(x_in, w0, w1, b2d, y_col0)

    return out if L_pad == L else out[:, :, :L]


def _ref_forward(x_ncl, weight, bias):
    """Plain-JAX f32 reference reproducing the PyTorch forward exactly."""
    xp = jnp.pad(x_ncl, ((0, 0), (0, 0), (1, 1)))                 # padding=1 both sides
    conv = (jnp.einsum('oc,bct->bot', weight[:, :, 0], xp[:, :, :-1])
            + jnp.einsum('oc,bct->bot', weight[:, :, 1], xp[:, :, 1:])
            + bias[None, :, None])                                # length L+1
    vec = jax.nn.relu(conv)
    return x_ncl + vec[:, :, :-1]


if __name__ == "__main__":
    B, d_model, L = 2, 32, 16

    key = jax.random.PRNGKey(0)
    k_x, k_w, k_b = jax.random.split(key, 3)

    # Parameter init mimicking PyTorch Conv1d default:
    # uniform(-bound, bound), bound = 1 / sqrt(in_channels * kernel_size)
    bound = 1.0 / jnp.sqrt(jnp.asarray(d_model * 2, jnp.float32))
    weight = jax.random.uniform(k_w, (d_model, d_model, 2), jnp.float32,
                                minval=-bound, maxval=bound)
    bias = jax.random.uniform(k_b, (d_model,), jnp.float32,
                              minval=-bound, maxval=bound)
    x = jax.random.normal(k_x, (B, d_model, L), jnp.float32)

    y_ref = _ref_forward(x, weight, bias)

    # f32 I/O path: must match the PyTorch reference tightly.
    y_f32 = jax.block_until_ready(
        lie_func_forward(x, weight, bias, io_dtype=jnp.float32))
    assert y_f32.shape == (B, d_model, L)
    assert jnp.allclose(y_f32, y_ref, atol=1e-5, rtol=1e-5)

    # bf16 I/O path (default, bandwidth-optimized): relaxed tolerance.
    y_bf16 = jax.block_until_ready(lie_func_forward(x, weight, bias))
    assert y_bf16.shape == (B, d_model, L)
    assert jnp.allclose(y_bf16.astype(jnp.float32), y_ref, atol=5e-2, rtol=5e-2)

    print("KERNEL_OK")
</pallas_src>

<mosaic_0001>
module attributes {stable_mosaic.version = 11 : i64} {
  func.func @lie_func_kernel(%arg0: i32, %arg1: i32, %arg2: memref<2x32x128xf32, #tpu.memory_space<vmem>>, %arg3: memref<32x32xf32, #tpu.memory_space<vmem>>, %arg4: memref<32x32xf32, #tpu.memory_space<vmem>>, %arg5: memref<32x1xf32, #tpu.memory_space<vmem>>, %arg6: memref<2x1x32x1xf32, #tpu.memory_space<vmem>>, %arg7: memref<2x32x128xf32, #tpu.memory_space<vmem>>) attributes {dimension_semantics = [#tpu.dimension_semantics<parallel>, #tpu.dimension_semantics<parallel>], iteration_bounds = array<i64: 1, 1>, scalar_prefetch = 0 : i64, scratch_operands = 0 : i64, tpu.core_type = #tpu.core_type<tc>, window_params = [{transform_indices = @transform_0, window_bounds = array<i64: 2, 32, 128>}, {pipeline_mode = #tpu.pipeline_mode<synchronous>, transform_indices = @transform_1, window_bounds = array<i64: 32, 32>}, {pipeline_mode = #tpu.pipeline_mode<synchronous>, transform_indices = @transform_2, window_bounds = array<i64: 32, 32>}, {pipeline_mode = #tpu.pipeline_mode<synchronous>, transform_indices = @transform_3, window_bounds = array<i64: 32, 1>}, {transform_indices = @transform_4, window_bounds = array<i64: 2, 1, 32, 1>}, {transform_indices = @transform_5, window_bounds = array<i64: 2, 32, 128>}]} {
    %c0 = arith.constant 0 : index
    %c0_0 = arith.constant 0 : index
    %0 = vector.load %arg3[%c0, %c0_0] : memref<32x32xf32, #tpu.memory_space<vmem>>, vector<32x32xf32>
    %c0_1 = arith.constant 0 : index
    %c0_2 = arith.constant 0 : index
    %1 = vector.load %arg4[%c0_1, %c0_2] : memref<32x32xf32, #tpu.memory_space<vmem>>, vector<32x32xf32>
    %c0_3 = arith.constant 0 : index
    %c0_4 = arith.constant 0 : index
    %2 = vector.load %arg5[%c0_3, %c0_4] : memref<32x1xf32, #tpu.memory_space<vmem>>, vector<32x1xf32>
    %c0_5 = arith.constant 0 : index
    %c0_6 = arith.constant 0 : index
    %c0_7 = arith.constant 0 : index
    %3 = vector.load %arg2[%c0_5, %c0_6, %c0_7] : memref<2x32x128xf32, #tpu.memory_space<vmem>>, vector<1x32x128xf32>
    %4 = vector.shape_cast %3 : vector<1x32x128xf32> to vector<32x128xf32>
    %cst = arith.constant dense<0.000000e+00> : vector<32x128xf32>
    %5 = tpu.matmul %0, %4, %cst {dimension_numbers = #tpu.dot_dimension_numbers<[1], [0], [0], [1], [0, 0, 1, 1], [], []>} : vector<32x32xf32>, vector<32x128xf32>, vector<32x128xf32> -> vector<32x128xf32>
    %cst_8 = arith.constant dense<0.000000e+00> : vector<32x128xf32>
    %6 = tpu.matmul %1, %4, %cst_8 {dimension_numbers = #tpu.dot_dimension_numbers<[1], [0], [0], [1], [0, 0, 1, 1], [], []>} : vector<32x32xf32>, vector<32x128xf32>, vector<32x128xf32> -> vector<32x128xf32>
    %c1_i32 = arith.constant 1 : i32
    %7 = tpu.dynamic_rotate %5 by %c1_i32 dim 1 : vector<32x128xf32>, i32 -> vector<32x128xf32>
    %8 = arith.addf %7, %6 : vector<32x128xf32>
    %9 = vector.broadcast %2 : vector<32x1xf32> to vector<32x128xf32>
    %10 = arith.addf %8, %9 : vector<32x128xf32>
    %cst_9 = arith.constant 0.000000e+00 : f32
    %11 = vector.broadcast %cst_9 : f32 to vector<32x128xf32>
    %12 = arith.maximumf %10, %11 : vector<32x128xf32>
    %13 = arith.addf %4, %12 : vector<32x128xf32>
    %c0_10 = arith.constant 0 : index
    %c0_11 = arith.constant 0 : index
    %c0_12 = arith.constant 0 : index
    %14 = vector.load %arg7[%c0_10, %c0_11, %c0_12] : memref<2x32x128xf32, #tpu.memory_space<vmem>>, vector<1x32x128xf32>
    %15 = vector.shape_cast %14 : vector<1x32x128xf32> to vector<32x128xf32>
    %16 = vector.shape_cast %13 : vector<32x128xf32> to vector<1x32x128xf32>
    tpu.vector_store %arg7[%c0_10, %c0_11, %c0_12], %16 {strides = array<i32>} : memref<2x32x128xf32, #tpu.memory_space<vmem>>, vector<1x32x128xf32>,
    %c0_13 = arith.constant 0 : index
    %c0_14 = arith.constant 0 : index
    %c0_15 = arith.constant 0 : index
    %c0_16 = arith.constant 0 : index
    %17 = vector.load %arg6[%c0_13, %c0_14, %c0_15, %c0_16] : memref<2x1x32x1xf32, #tpu.memory_space<vmem>>, vector<1x1x32x1xf32>
    %18 = vector.shape_cast %17 : vector<1x1x32x1xf32> to vector<32x1xf32>
    %c0_17 = arith.constant 0 : index
    %c0_18 = arith.constant 0 : index
    %c0_19 = arith.constant 0 : index
    %19 = vector.load %arg7[%c0_17, %c0_18, %c0_19] : memref<2x32x128xf32, #tpu.memory_space<vmem>>, vector<1x32x1xf32>
    %20 = vector.shape_cast %19 : vector<1x32x1xf32> to vector<32x1xf32>
    %21 = vector.shape_cast %18 : vector<32x1xf32> to vector<1x32x1xf32>
    tpu.vector_store %arg7[%c0_17, %c0_18, %c0_19], %21 {strides = array<i32>} : memref<2x32x128xf32, #tpu.memory_space<vmem>>, vector<1x32x1xf32>,
    %c1 = arith.constant 1 : index
    %c0_20 = arith.constant 0 : index
    %c0_21 = arith.constant 0 : index
    %22 = vector.load %arg2[%c1, %c0_20, %c0_21] : memref<2x32x128xf32, #tpu.memory_space<vmem>>, vector<1x32x128xf32>
    %23 = vector.shape_cast %22 : vector<1x32x128xf32> to vector<32x128xf32>
    %cst_22 = arith.constant dense<0.000000e+00> : vector<32x128xf32>
    %24 = tpu.matmul %0, %23, %cst_22 {dimension_numbers = #tpu.dot_dimension_numbers<[1], [0], [0], [1], [0, 0, 1, 1], [], []>} : vector<32x32xf32>, vector<32x128xf32>, vector<32x128xf32> -> vector<32x128xf32>
    %cst_23 = arith.constant dense<0.000000e+00> : vector<32x128xf32>
    %25 = tpu.matmul %1, %23, %cst_23 {dimension_numbers = #tpu.dot_dimension_numbers<[1], [0], [0], [1], [0, 0, 1, 1], [], []>} : vector<32x32xf32>, vector<32x128xf32>, vector<32x128xf32> -> vector<32x128xf32>
    %c1_i32_24 = arith.constant 1 : i32
    %26 = tpu.dynamic_rotate %24 by %c1_i32_24 dim 1 : vector<32x128xf32>, i32 -> vector<32x128xf32>
    %27 = arith.addf %26, %25 : vector<32x128xf32>
    %28 = vector.broadcast %2 : vector<32x1xf32> to vector<32x128xf32>
    %29 = arith.addf %27, %28 : vector<32x128xf32>
    %cst_25 = arith.constant 0.000000e+00 : f32
    %30 = vector.broadcast %cst_25 : f32 to vector<32x128xf32>
    %31 = arith.maximumf %29, %30 : vector<32x128xf32>
    %32 = arith.addf %23, %31 : vector<32x128xf32>
    %c1_26 = arith.constant 1 : index
    %c0_27 = arith.constant 0 : index
    %c0_28 = arith.constant 0 : index
    %33 = vector.load %arg7[%c1_26, %c0_27, %c0_28] : memref<2x32x128xf32, #tpu.memory_space<vmem>>, vector<1x32x128xf32>
    %34 = vector.shape_cast %33 : vector<1x32x128xf32> to vector<32x128xf32>
    %35 = vector.shape_cast %32 : vector<32x128xf32> to vector<1x32x128xf32>
    tpu.vector_store %arg7[%c1_26, %c0_27, %c0_28], %35 {strides = array<i32>} : memref<2x32x128xf32, #tpu.memory_space<vmem>>, vector<1x32x128xf32>,
    %c1_29 = arith.constant 1 : index
    %c0_30 = arith.constant 0 : index
    %c0_31 = arith.constant 0 : index
    %c0_32 = arith.constant 0 : index
    %36 = vector.load %arg6[%c1_29, %c0_30, %c0_31, %c0_32] : memref<2x1x32x1xf32, #tpu.memory_space<vmem>>, vector<1x1x32x1xf32>
    %37 = vector.shape_cast %36 : vector<1x1x32x1xf32> to vector<32x1xf32>
    %c1_33 = arith.constant 1 : index
    %c0_34 = arith.constant 0 : index
    %c0_35 = arith.constant 0 : index
    %38 = vector.load %arg7[%c1_33, %c0_34, %c0_35] : memref<2x32x128xf32, #tpu.memory_space<vmem>>, vector<1x32x1xf32>
    %39 = vector.shape_cast %38 : vector<1x32x1xf32> to vector<32x1xf32>
    %40 = vector.shape_cast %37 : vector<32x1xf32> to vector<1x32x1xf32>
    tpu.vector_store %arg7[%c1_33, %c0_34, %c0_35], %40 {strides = array<i32>} : memref<2x32x128xf32, #tpu.memory_space<vmem>>, vector<1x32x1xf32>,
    return
  }
  func.func @transform_0(%arg0: i32, %arg1: i32) -> (i32, i32, i32) {
    %c0_i32 = arith.constant 0 : i32
    %c0_i32_0 = arith.constant 0 : i32
    return %arg0, %c0_i32, %arg1 : i32, i32, i32
  }
  func.func @transform_1(%arg0: i32, %arg1: i32) -> (i32, i32) {
    %c0_i32 = arith.constant 0 : i32
    %c0_i32_0 = arith.constant 0 : i32
    %c0_i32_1 = arith.constant 0 : i32
    return %c0_i32, %c0_i32_0 : i32, i32
  }
  func.func @transform_2(%arg0: i32, %arg1: i32) -> (i32, i32) {
    %c0_i32 = arith.constant 0 : i32
    %c0_i32_0 = arith.constant 0 : i32
    %c0_i32_1 = arith.constant 0 : i32
    return %c0_i32, %c0_i32_0 : i32, i32
  }
  func.func @transform_3(%arg0: i32, %arg1: i32) -> (i32, i32) {
    %c0_i32 = arith.constant 0 : i32
    %c0_i32_0 = arith.constant 0 : i32
    %c0_i32_1 = arith.constant 0 : i32
    return %c0_i32, %c0_i32_0 : i32, i32
  }
  func.func @transform_4(%arg0: i32, %arg1: i32) -> (i32, i32, i32, i32) {
    %c0_i32 = arith.constant 0 : i32
    %c0_i32_0 = arith.constant 0 : i32
    %c0_i32_1 = arith.constant 0 : i32
    return %arg0, %arg1, %c0_i32, %c0_i32_0 : i32, i32, i32, i32
  }
  func.func @transform_5(%arg0: i32, %arg1: i32) -> (i32, i32, i32) {
    %c0_i32 = arith.constant 0 : i32
    %c0_i32_0 = arith.constant 0 : i32
    return %arg0, %c0_i32, %arg1 : i32, i32, i32
  }
}

</mosaic_0001>

<llo_original>
// kernel: tpu_custom_call.1
$region0: #{tpu_custom_call.1}
  #allocation0 [shape = 'u32[]', space=smem, size = 0x4, offset = 0x4, fixed_abs, tag = 'smem constant byte address 0x4 - core index']
  #allocation1 [shape = 'u32[72,128]{1,0:T(1,128)}', space=vmem, size = 0x9000, scoped, tag = 'internal scratch']
  %s0 = inlined_call_operand.vmem [shape: f32[2,32,128], index: 0, kind: input, shape index: {}]
  %s1 = inlined_call_operand.vmem [shape: f32[32,32], index: 1, kind: input, shape index: {}]
  %s2 = inlined_call_operand.hbm [shape: f32[32,32], index: 2, kind: input, shape index: {}]
  %s3 = inlined_call_operand.vmem [shape: f32[32,1], index: 3, kind: input, shape index: {}]
  %s4 = inlined_call_operand.vmem [shape: f32[2,1,32,1], index: 4, kind: input, shape index: {}]
  %s5 = inlined_call_operand.hbm [shape: f32[2,32,128], index: 5, kind: output, shape index: {}]
  %s6 = sld [smem:[#allocation0]]
  $region34: #{tpu_custom_call.1} parent=0
    _
  %s8 = ssub.s32 1, %s6
  %s9 = scalar_select 0, %s8, %s6
  $region1: #{tpu_custom_call.1} parent=0
    #allocation2 [shape = 'u8[16384]{0}', space=vmem, size = 0x4000, scoped, tag = 'input window, operand 2, single buffered']
    #allocation3 [shape = 's32[1]{0}', space=sflag, size = 0x4, scoped, tag = 'scoped memory for tpu_custom_call.1']
    #allocation4 [shape = 's32[1]{0}', space=sflag, size = 0x4, scoped, tag = 'scoped memory for tpu_custom_call.1']
    #allocation5 [shape = 'u8[32768]{0}', space=vmem, size = 0x8000, scoped, tag = 'output window, operand 0, single buffered']
    %10 = vsyncpa [#allocation3], 0
    %11 = vsyncpa [#allocation4], 0
    // Predicated region
    $region2: #{tpu_custom_call.1} parent=1 // pred_check
      _
    $region3: #{tpu_custom_call.1} parent=1 // pred_check_branch
      %13 = sbr.rel (0) target = $region5
    $region4: #{tpu_custom_call.1} parent=1 // pred_region
      _
    $region5: #{tpu_custom_call.1} parent=1 // pred_fallthru
      _
    // Predicated region
    $region6: #{tpu_custom_call.1} parent=1 // pred_check
      _
    $region7: #{tpu_custom_call.1} parent=1 // pred_check_branch
      %15 = sbr.rel (0) target = $region9
    $region8: #{tpu_custom_call.1} parent=1 // pred_region
      _
    $region9: #{tpu_custom_call.1} parent=1 // pred_fallthru
      _
    // Predicated region
    $region10: #{tpu_custom_call.1} parent=1 // pred_check
      _
    $region11: #{tpu_custom_call.1} parent=1 // pred_check_branch
      %17 = sbr.rel (0) target = $region13
    $region12: #{tpu_custom_call.1} parent=1 // pred_region
      %19 = vsyncadd [#allocation3], 0
      %s20 = sshll.u32 %s2, 4
      %s21 = int_to_ptr.hbm [resolvable:$true] %s20
      %s22 = sshll.u32 [#allocation2], 4
      %s23 = int_to_ptr.vmem [resolvable:$true] %s22
      %28 = dma.hbm_to_vmem [thread:$0]  %s21, 512, %s23, [#allocation3], 128, 128, 8
    $region13: #{tpu_custom_call.1} parent=1 // pred_fallthru
      _
    // Predicated region
    $region14: #{tpu_custom_call.1} parent=1 // pred_check
      _
    $region15: #{tpu_custom_call.1} parent=1 // pred_check_branch
      %30 = sbr.rel (0) target = $region17
    $region16: #{tpu_custom_call.1} parent=1 // pred_region
      _
    $region17: #{tpu_custom_call.1} parent=1 // pred_fallthru
      _
    // Predicated region
    $region18: #{tpu_custom_call.1} parent=1 // pred_check
      _
    $region19: #{tpu_custom_call.1} parent=1 // pred_check_branch
      %32 = sbr.rel (0) target = $region21
    $region20: #{tpu_custom_call.1} parent=1 // pred_region
      _
    $region21: #{tpu_custom_call.1} parent=1 // pred_fallthru
      _
    // Predicated region
    $region22: #{tpu_custom_call.1} parent=1 // pred_check
      _
    $region23: #{tpu_custom_call.1} parent=1 // pred_check_branch
      %34 = sbr.rel (0) target = $region25
    $region24: #{tpu_custom_call.1} parent=1 // pred_region
      %36 = dma.done [#allocation3], 512
    $region25: #{tpu_custom_call.1} parent=1 // pred_fallthru
      _
    %v37 = vld [vmem:[%s1] sm:$0xff]
    %v38 = vld [vmem:[%s1 + $0x8] sm:$0xff]
    %v39 = vld [vmem:[%s1 + $0x10] sm:$0xff]
    %v40 = vld [vmem:[%s1 + $0x18] sm:$0xff]
    %v41 = vld [vmem:[#allocation2] sm:$0xff]
    %v42 = vld [vmem:[#allocation2 + $0x8] sm:$0xff]
    %v43 = vld [vmem:[#allocation2 + $0x10] sm:$0xff]
    %v44 = vld [vmem:[#allocation2 + $0x18] sm:$0xff]
    %v45 = vld [vmem:[%s3] sm:$0xff]
    %v46 = vld [vmem:[%s3 + $0x8] sm:$0xff]
    %v47 = vld [vmem:[%s3 + $0x10] sm:$0xff]
    %v48 = vld [vmem:[%s3 + $0x18] sm:$0xff]
    %v49 = vld [vmem:[%s0] sm:$0xff]
    %v50 = vld [vmem:[%s0 + $0x8] sm:$0xff]
    %v51 = vld [vmem:[%s0 + $0x10] sm:$0xff]
    %v52 = vld [vmem:[%s0 + $0x18] sm:$0xff]
    %vm53 = vcmask 261120
    %v55 = vsel %vm53, %v37, 0
    %v58 = vsel %vm53, %v38, 0
    %v61 = vsel %vm53, %v39, 0
    %v64 = vsel %vm53, %v40, 0
    %66 = vmatpush.msra.mxu0 0.0
    %67 = vmatpush.msra.mxu0 0.0
    %68 = vmatpush.msra.mxu0 0.0
    %69 = vmatpush.msra.mxu0 0.0
    %70 = vmatpush.msra.mxu0 0.0
    %71 = vmatpush.msra.mxu0 0.0
    %72 = vmatpush.msra.mxu0 0.0
    %73 = vmatpush.msra.mxu0 0.0
    %74 = vmatpush.msra.mxu0 0.0
    %75 = vmatpush.msra.mxu0 0.0
    %76 = vmatpush.msra.mxu0 0.0
    %77 = vmatpush.msra.mxu0 0.0
    %78 = vmatpush.msra.mxu0 %v52
    %79 = vmatpush.msra.mxu0 %v51
    %80 = vmatpush.msra.mxu0 %v50
    %81 = vmatpush.msra.mxu0 %v49
    %82 = vmatmul.f32.gmra.mxu0 %v55
    %v83 = vpop.f32.mrf.mxu0
    %v84 = vadd.f32 0.0, %v83
    %85 = vmatmul.f32.gmra.mxu0 %v58
    %v86 = vpop.f32.mrf.mxu0
    %v87 = vadd.f32 0.0, %v86
    %88 = vmatmul.f32.gmra.mxu0 %v61
    %v89 = vpop.f32.mrf.mxu0
    %v90 = vadd.f32 0.0, %v89
    %91 = vmatmul.f32.gmra.mxu0 %v64
    %v92 = vpop.f32.mrf.mxu0
    %v93 = vadd.f32 0.0, %v92
    %94 = vdwg.mxu0
    %v96 = vsel %vm53, %v41, 0
    %v99 = vsel %vm53, %v42, 0
    %v102 = vsel %vm53, %v43, 0
    %v105 = vsel %vm53, %v44, 0
    %107 = vmatpush.msra.mxu0 0.0
    %108 = vmatpush.msra.mxu0 0.0
    %109 = vmatpush.msra.mxu0 0.0
    %110 = vmatpush.msra.mxu0 0.0
    %111 = vmatpush.msra.mxu0 0.0
    %112 = vmatpush.msra.mxu0 0.0
    %113 = vmatpush.msra.mxu0 0.0
    %114 = vmatpush.msra.mxu0 0.0
    %115 = vmatpush.msra.mxu0 0.0
    %116 = vmatpush.msra.mxu0 0.0
    %117 = vmatpush.msra.mxu0 0.0
    %118 = vmatpush.msra.mxu0 0.0
    %119 = vmatpush.msra.mxu0 %v52
    %120 = vmatpush.msra.mxu0 %v51
    %121 = vmatpush.msra.mxu0 %v50
    %122 = vmatpush.msra.mxu0 %v49
    %123 = vmatmul.f32.gmra.mxu0 %v96
    %v124 = vpop.f32.mrf.mxu0
    %v125 = vadd.f32 0.0, %v124
    %126 = vmatmul.f32.gmra.mxu0 %v99
    %v127 = vpop.f32.mrf.mxu0
    %v128 = vadd.f32 0.0, %v127
    %129 = vmatmul.f32.gmra.mxu0 %v102
    %v130 = vpop.f32.mrf.mxu0
    %v131 = vadd.f32 0.0, %v130
    %132 = vmatmul.f32.gmra.mxu0 %v105
    %v133 = vpop.f32.mrf.mxu0
    %v134 = vadd.f32 0.0, %v133
    %135 = vdwg.mxu0
    %136 = vrot.lane.b32.xlu0 %v84, 1
    %v137 = vpop.permute.xlu0 %136
    %138 = vrot.lane.b32.xlu0 %v87, 1
    %v139 = vpop.permute.xlu0 %138
    %140 = vrot.lane.b32.xlu0 %v90, 1
    %v141 = vpop.permute.xlu0 %140
    %142 = vrot.lane.b32.xlu0 %v93, 1
    %v143 = vpop.permute.xlu0 %142
    %v144 = vadd.f32 %v137, %v125
    %v145 = vadd.f32 %v139, %v128
    %v146 = vadd.f32 %v141, %v131
    %v147 = vadd.f32 %v143, %v134
    %149 = vset.pattern.permute.xlu0 0
    %150 = vperm.xlu0 %149, %v45
    %v151 = vpop.permute.xlu0 %150
    %154 = vset.pattern.permute.xlu0 0
    %155 = vperm.xlu0 %154, %v46
    %v156 = vpop.permute.xlu0 %155
    %159 = vset.pattern.permute.xlu0 0
    %160 = vperm.xlu0 %159, %v47
    %v161 = vpop.permute.xlu0 %160
    %164 = vset.pattern.permute.xlu0 0
    %165 = vperm.xlu0 %164, %v48
    %v166 = vpop.permute.xlu0 %165
    %v168 = vadd.f32 %v144, %v151
    %v169 = vadd.f32 %v145, %v156
    %v170 = vadd.f32 %v146, %v161
    %v171 = vadd.f32 %v147, %v166
    %v172 = vmax.f32 %v168, 0.0
    %v173 = vmax.f32 %v169, 0.0
    %v174 = vmax.f32 %v170, 0.0
    %v175 = vmax.f32 %v171, 0.0
    %v176 = vadd.f32 %v49, %v172
    %v177 = vadd.f32 %v50, %v173
    %v178 = vadd.f32 %v51, %v174
    %v179 = vadd.f32 %v52, %v175
    %180 = vst [vmem:[#allocation5] sm:$0xff] %v176
    %181 = vst [vmem:[#allocation5 + $0x8] sm:$0xff] %v177
    %182 = vst [vmem:[#allocation5 + $0x10] sm:$0xff] %v178
    %183 = vst [vmem:[#allocation5 + $0x18] sm:$0xff] %v179
    %v184 = vld [vmem:[%s4] sm:$0xff]
    %v185 = vld [vmem:[%s4 + $0x8] sm:$0xff]
    %v186 = vld [vmem:[%s4 + $0x10] sm:$0xff]
    %v187 = vld [vmem:[%s4 + $0x18] sm:$0xff]
    %vm188 = vcmask 7168
    %189 = vst.msk [vmem:[#allocation5] sm:$0xff] %vm188, %v184
    %190 = vst.msk [vmem:[#allocation5 + $0x8] sm:$0xff] %vm188, %v185
    %191 = vst.msk [vmem:[#allocation5 + $0x10] sm:$0xff] %vm188, %v186
    %192 = vst.msk [vmem:[#allocation5 + $0x18] sm:$0xff] %vm188, %v187
    %s193 = scalar_lea.vmem %s0, 32
    %v194 = vld [vmem:[%s193] sm:$0xff]
    %v195 = vld [vmem:[%s193 + $0x8] sm:$0xff]
    %v196 = vld [vmem:[%s193 + $0x10] sm:$0xff]
    %v197 = vld [vmem:[%s193 + $0x18] sm:$0xff]
    %198 = vmatpush.msra.mxu0 0.0
    %199 = vmatpush.msra.mxu0 0.0
    %200 = vmatpush.msra.mxu0 0.0
    %201 = vmatpush.msra.mxu0 0.0
    %202 = vmatpush.msra.mxu0 0.0
    %203 = vmatpush.msra.mxu0 0.0
    %204 = vmatpush.msra.mxu0 0.0
    %205 = vmatpush.msra.mxu0 0.0
    %206 = vmatpush.msra.mxu0 0.0
    %207 = vmatpush.msra.mxu0 0.0
    %208 = vmatpush.msra.mxu0 0.0
    %209 = vmatpush.msra.mxu0 0.0
    %210 = vmatpush.msra.mxu0 %v197
    %211 = vmatpush.msra.mxu0 %v196
    %212 = vmatpush.msra.mxu0 %v195
    %213 = vmatpush.msra.mxu0 %v194
    %214 = vmatmul.f32.gmra.mxu0 %v55
    %v215 = vpop.f32.mrf.mxu0
    %v216 = vadd.f32 0.0, %v215
    %217 = vmatmul.f32.gmra.mxu0 %v58
    %v218 = vpop.f32.mrf.mxu0
    %v219 = vadd.f32 0.0, %v218
    %220 = vmatmul.f32.gmra.mxu0 %v61
    %v221 = vpop.f32.mrf.mxu0
    %v222 = vadd.f32 0.0, %v221
    %223 = vmatmul.f32.gmra.mxu0 %v64
    %v224 = vpop.f32.mrf.mxu0
    %v225 = vadd.f32 0.0, %v224
    %226 = vdwg.mxu0
    %227 = vmatpush.msra.mxu0 0.0
    %228 = vmatpush.msra.mxu0 0.0
    %229 = vmatpush.msra.mxu0 0.0
    %230 = vmatpush.msra.mxu0 0.0
    %231 = vmatpush.msra.mxu0 0.0
    %232 = vmatpush.msra.mxu0 0.0
    %233 = vmatpush.msra.mxu0 0.0
    %234 = vmatpush.msra.mxu0 0.0
    %235 = vmatpush.msra.mxu0 0.0
    %236 = vmatpush.msra.mxu0 0.0
    %237 = vmatpush.msra.mxu0 0.0
    %238 = vmatpush.msra.mxu0 0.0
    %239 = vmatpush.msra.mxu0 %v197
    %240 = vmatpush.msra.mxu0 %v196
    %241 = vmatpush.msra.mxu0 %v195
    %242 = vmatpush.msra.mxu0 %v194
    %243 = vmatmul.f32.gmra.mxu0 %v96
    %v244 = vpop.f32.mrf.mxu0
    %v245 = vadd.f32 0.0, %v244
    %246 = vmatmul.f32.gmra.mxu0 %v99
    %v247 = vpop.f32.mrf.mxu0
    %v248 = vadd.f32 0.0, %v247
    %249 = vmatmul.f32.gmra.mxu0 %v102
    %v250 = vpop.f32.mrf.mxu0
    %v251 = vadd.f32 0.0, %v250
    %252 = vmatmul.f32.gmra.mxu0 %v105
    %v253 = vpop.f32.mrf.mxu0
    %v254 = vadd.f32 0.0, %v253
    %255 = vdwg.mxu0
    %256 = vrot.lane.b32.xlu0 %v216, 1
    %v257 = vpop.permute.xlu0 %256
    %258 = vrot.lane.b32.xlu0 %v219, 1
    %v259 = vpop.permute.xlu0 %258
    %260 = vrot.lane.b32.xlu0 %v222, 1
    %v261 = vpop.permute.xlu0 %260
    %262 = vrot.lane.b32.xlu0 %v225, 1
    %v263 = vpop.permute.xlu0 %262
    %v264 = vadd.f32 %v257, %v245
    %v265 = vadd.f32 %v259, %v248
    %v266 = vadd.f32 %v261, %v251
    %v267 = vadd.f32 %v263, %v254
    %v268 = vadd.f32 %v264, %v151
    %v269 = vadd.f32 %v265, %v156
    %v270 = vadd.f32 %v266, %v161
    %v271 = vadd.f32 %v267, %v166
    %v272 = vmax.f32 %v268, 0.0
    %v273 = vmax.f32 %v269, 0.0
    %v274 = vmax.f32 %v270, 0.0
    %v275 = vmax.f32 %v271, 0.0
    %v276 = vadd.f32 %v194, %v272
    %v277 = vadd.f32 %v195, %v273
    %v278 = vadd.f32 %v196, %v274
    %v279 = vadd.f32 %v197, %v275
    %s280 = scalar_lea.vmem [#allocation5], 32
    %281 = vst [vmem:[%s280] sm:$0xff] %v276
    %282 = vst [vmem:[%s280 + $0x8] sm:$0xff] %v277
    %283 = vst [vmem:[%s280 + $0x10] sm:$0xff] %v278
    %284 = vst [vmem:[%s280 + $0x18] sm:$0xff] %v279
    %s285 = scalar_lea.vmem %s4, 32
    %v286 = vld [vmem:[%s285] sm:$0xff]
    %v287 = vld [vmem:[%s285 + $0x8] sm:$0xff]
    %v288 = vld [vmem:[%s285 + $0x10] sm:$0xff]
    %v289 = vld [vmem:[%s285 + $0x18] sm:$0xff]
    %290 = vst.msk [vmem:[%s280] sm:$0xff] %vm188, %v286
    %291 = vst.msk [vmem:[%s280 + $0x8] sm:$0xff] %vm188, %v287
    %292 = vst.msk [vmem:[%s280 + $0x10] sm:$0xff] %vm188, %v288
    %293 = vst.msk [vmem:[%s280 + $0x18] sm:$0xff] %vm188, %v289
    // Predicated region
    $region26: #{tpu_custom_call.1} parent=1 // pred_check
      _
    $region27: #{tpu_custom_call.1} parent=1 // pred_check_branch
      %295 = sbr.rel (0) target = $region29
    $region28: #{tpu_custom_call.1} parent=1 // pred_region
      %297 = vsyncadd [#allocation4], 0
      %s298 = sshll.u32 [#allocation5], 4
      %s299 = int_to_ptr.vmem [resolvable:$true] %s298
      %s300 = sshll.u32 %s5, 4
      %s301 = int_to_ptr.hbm [resolvable:$true] %s300
      %306 = dma.vmem_to_hbm [thread:$0]  %s299, 1024, %s301, [#allocation4], 128, 128, 8
    $region29: #{tpu_custom_call.1} parent=1 // pred_fallthru
      _
    // Predicated region
    $region30: #{tpu_custom_call.1} parent=1 // pred_check
      _
    $region31: #{tpu_custom_call.1} parent=1 // pred_check_branch
      %308 = sbr.rel (0) target = $region33
    $region32: #{tpu_custom_call.1} parent=1 // pred_region
      %310 = dma.done [#allocation4], 1024
    $region33: #{tpu_custom_call.1} parent=1 // pred_fallthru
      _
    %311 = vsyncpa [#allocation3], 1
    %312 = vsyncpa [#allocation4], 1

</llo_original>
